<compile_context>
chip_gen: v7x
topology: tpu7x:2x2x1
jax: 0.10.0
libtpu: 0.0.40
codegen_flags: <defaults>
</compile_context>

<pallas_src>
import numpy as np
import jax
import jax.numpy as jnp
from jax.experimental import pallas as pl
from jax.experimental.pallas import tpu as pltpu


def _round_up(x, m):
    return ((x + m - 1) // m) * m


def _default_num_cores():
    """2 TensorCores on v7x-class (and v4/v5p megacore) parts, else 1.

    Detection failure falls back to 1; the value only affects scheduling
    (the "parallel" hint and the number of partial pooled slabs), never
    correctness.
    """
    try:
        kind = (jax.devices()[0].device_kind or "").lower()
    except Exception:
        return 1
    if any(tag in kind for tag in ("v7", "7x", "v4", "v5p")):
        return 2
    return 1


# --------------------------------------------------------------------------- #
# Kernels
# --------------------------------------------------------------------------- #
def _make_stream_kernel(n_table_layers, tm, tiles_per_core):
    """Streaming kernel: table MLP on a row tile + interval-mask segment sum.

    Ref order: x, seg_lo, seg_hi, (W_k, b_k) * n_table_layers, pooled_out.
    pooled_out is the (b_pad, h_pad) f32 partial-sum slab of the current core
    (output block constant across the "arbitrary" tile axis => accumulator).
    """
    n_params = 2 * n_table_layers

    def kernel(*refs):
        x_ref, lo_ref, hi_ref = refs[0], refs[1], refs[2]
        param_refs = refs[3:3 + n_params]
        pooled_ref = refs[3 + n_params]            # (b_pad, h_pad) f32

        c = pl.program_id(0)                        # core slab
        i = pl.program_id(1)                        # row tile within the slab

        @pl.when(i == 0)
        def _init():
            pooled_ref[...] = jnp.zeros_like(pooled_ref)

        # ---- table MLP: bf16 operands on the MXU, f32 accumulation ----
        h = x_ref[...]                              # (tm, F) bf16
        for k in range(n_table_layers):
            w = param_refs[2 * k][...]              # (fin_p, fout_p) bf16
            b = param_refs[2 * k + 1][...]          # (1, fout_p) f32
            h = jnp.maximum(
                jnp.dot(h, w, preferred_element_type=jnp.float32) + b, 0.0)
            h = h.astype(jnp.bfloat16)              # next MXU operand

        # ---- ragged segment sum (torch.index_add_) for this tile ----
        # Interval mask: mask[s, r] = 1 iff global row r belongs to segment s.
        row0 = (c * tiles_per_core + i) * tm
        gr = row0 + jax.lax.broadcasted_iota(jnp.int32, (1, tm), 1)
        inside = jnp.logical_and(gr >= lo_ref[...], gr < hi_ref[...])
        mask = jnp.where(inside, 1.0, 0.0).astype(jnp.bfloat16)   # (b_pad, tm)
        pooled_ref[...] += jnp.dot(mask, h, preferred_element_type=jnp.float32)

    return kernel


def _make_head_kernel(n_pred_layers):
    """Cross-core reduce + prediction MLP; lane-dense (1, b_pad) output.

    Ref order: pooled_parts, (W_k, b_k) * n_pred_layers (last weight already
    transposed to a (1, H) row), out.
    """
    n_params = 2 * n_pred_layers

    def kernel(*refs):
        pooled_ref = refs[0]                        # (num_cores, b_pad, h_pad) f32
        param_refs = refs[1:1 + n_params]
        out_ref = refs[1 + n_params]                # (1, b_pad) f32

        p = jnp.sum(pooled_ref[...], axis=0)        # cross-core sum, f32
        for k in range(n_pred_layers - 1):
            w = param_refs[2 * k][...]              # bf16
            b = param_refs[2 * k + 1][...]          # f32
            p = jnp.maximum(
                jnp.dot(p.astype(jnp.bfloat16), w,
                        preferred_element_type=jnp.float32) + b, 0.0)

        w_last = param_refs[2 * (n_pred_layers - 1)][...]      # (1, H_pad) bf16
        b_last = param_refs[2 * (n_pred_layers - 1) + 1][...]  # (1, 1) f32
        # NT contraction (lanes of both operands) -> lane-dense (1, b_pad).
        out = jax.lax.dot_general(
            w_last, p.astype(jnp.bfloat16), (((1,), (1,)), ((), ())),
            preferred_element_type=jnp.float32) + b_last
        out_ref[...] = out

    return kernel


# --------------------------------------------------------------------------- #
# Parameters
# --------------------------------------------------------------------------- #
def init_params(key, num_table_features, table_mlp_sizes, pred_mlp_sizes):
    """Deterministic synthetic parameters mirroring the nn.Module shapes.

    Returns a flat tuple (Wt0, bt0, ..., Wc0, bc0, ...) with weights stored as
    (in, out) float32 and biases as (1, out) float32 (F.linear convention).
    """
    t_sizes = [num_table_features] + list(table_mlp_sizes)
    c_sizes = list(pred_mlp_sizes) + [1]

    params = []
    for sizes in (t_sizes, c_sizes):
        for k in range(len(sizes) - 1):
            fan_in, fan_out = sizes[k], sizes[k + 1]
            key, kw, kb = jax.random.split(key, 3)
            w = jax.random.normal(kw, (fan_in, fan_out), jnp.float32) * (
                1.0 / np.sqrt(fan_in))
            b = jax.random.normal(kb, (1, fan_out), jnp.float32) * 0.1
            params.append(w)
            params.append(b)
    return tuple(params), len(t_sizes) - 1, len(c_sizes) - 1


def _pad_params(params, n_table_layers, n_pred_layers, lane=128):
    """Zero-pad hidden feature dims to multiples of `lane` (exact math).

    Weights are cast to bf16 (MXU operands), biases stay f32.  The last
    layer's (H, 1) weight is returned transposed as a (1, H_pad) bf16 row for
    the lane-dense output matmul; its bias stays (1, 1) f32.
    """
    n_layers = n_table_layers + n_pred_layers
    padded = []
    in_dim = None
    idx = 0
    for li in range(n_layers):
        w, b = params[idx], params[idx + 1]
        idx += 2
        fin, fout = w.shape
        fin_p = fin if in_dim is None else in_dim        # chain padded widths
        last = li == n_layers - 1
        fout_p = fout if last else _round_up(fout, lane)
        w_p = jnp.pad(w.astype(jnp.float32),
                      ((0, fin_p - fin), (0, fout_p - fout)))
        b_p = jnp.pad(b.astype(jnp.float32), ((0, 0), (0, fout_p - fout)))
        if last:
            w_p = w_p.T                                   # (1, fin_p) row
        padded.append(w_p.astype(jnp.bfloat16))           # MXU operand
        padded.append(b_p)                                 # f32 bias
        in_dim = fout_p
    return padded


# --------------------------------------------------------------------------- #
# Wrapper
# --------------------------------------------------------------------------- #
def compute_cost_net_forward(X_list, params, n_table_layers, n_pred_layers,
                             tm=1024, num_cores=None):
    """Pallas-backed equivalent of ComputeCostNet.forward(X)."""
    if num_cores is None:
        num_cores = _default_num_cores()
    num_cores = max(1, int(num_cores))

    B = len(X_list)
    F = int(X_list[0].shape[1])
    lengths = [int(xi.shape[0]) for xi in X_list]
    N = int(sum(lengths))

    # Row-tile size: honor the caller / default but don't pad absurdly for
    # tiny inputs.  Multiples of 256 keep bf16 sublane tiling happy.
    tm = max(256, min(int(tm), _round_up(max(pl.cdiv(N, num_cores), 1), 256)))
    n_pad = _round_up(max(N, 1), tm * num_cores)
    tiles_per_core = n_pad // (tm * num_cores)
    b_pad = max(8, _round_up(B, 8))

    # Concatenated rows (bf16 -> halves the streaming DMA), padded to a whole
    # number of tiles per core.
    x = jnp.concatenate([xi.astype(jnp.float32) for xi in X_list], axis=0)
    x = jnp.pad(x, ((0, n_pad - N), (0, 0))).astype(jnp.bfloat16)

    # Per-segment [start, end) row offsets (segments are contiguous after cat).
    offs = np.concatenate([[0], np.cumsum(lengths)]).astype(np.int32)
    lo_np = np.zeros((b_pad, 1), np.int32)
    hi_np = np.zeros((b_pad, 1), np.int32)
    lo_np[:B, 0] = offs[:-1]
    hi_np[:B, 0] = offs[1:]
    lo = jnp.asarray(lo_np)
    hi = jnp.asarray(hi_np)

    pparams = _pad_params(params, n_table_layers, n_pred_layers)
    t_params = pparams[:2 * n_table_layers]
    c_params = pparams[2 * n_table_layers:]
    h_pad = t_params[-2].shape[1]                   # padded table-MLP width

    # Grid-invariant weight/bias blocks are DMA'd once; single-buffer them
    # when the layer widths are production-sized (saves resident VMEM on v7x).
    single_buf = max(p.shape[-1] for p in t_params) >= 512

    def param_spec(shape):
        if single_buf:
            return pl.BlockSpec(shape, lambda c, i: (0, 0),
                                pipeline_mode=pl.Buffered(1))
        return pl.BlockSpec(shape, lambda c, i: (0, 0))

    in_specs = (
        [pl.BlockSpec((tm, F), lambda c, i: (c * tiles_per_core + i, 0)),
         pl.BlockSpec((b_pad, 1), lambda c, i: (0, 0)),   # segment starts
         pl.BlockSpec((b_pad, 1), lambda c, i: (0, 0))]   # segment ends
        + [param_spec(p.shape) for p in t_params]
    )

    # Advisory cost estimate for XLA scheduling around the custom call.
    flops = 0
    for li in range(n_table_layers):
        w = t_params[2 * li]
        flops += 2 * n_pad * int(w.shape[0]) * int(w.shape[1])
    flops += 2 * n_pad * b_pad * h_pad              # segment-sum mask matmul
    bytes_acc = (int(x.size) * 2
                 + sum(int(p.size) * p.dtype.itemsize for p in t_params)
                 + (int(lo.size) + int(hi.size)) * 4
                 + num_cores * b_pad * h_pad * 4)
    cost = pl.CostEstimate(flops=int(flops), transcendentals=0,
                           bytes_accessed=int(bytes_acc))

    stream_kernel = _make_stream_kernel(n_table_layers, tm, tiles_per_core)
    pooled_parts = pl.pallas_call(
        stream_kernel,
        out_shape=jax.ShapeDtypeStruct((num_cores, b_pad, h_pad), jnp.float32),
        grid_spec=pltpu.PrefetchScalarGridSpec(
            num_scalar_prefetch=0,
            grid=(num_cores, tiles_per_core),
            in_specs=in_specs,
            out_specs=pl.BlockSpec((None, b_pad, h_pad),
                                   lambda c, i: (c, 0, 0)),
        ),
        compiler_params=pltpu.CompilerParams(
            dimension_semantics=("parallel", "arbitrary"),
            vmem_limit_bytes=32 * 1024 * 1024,
        ),
        cost_estimate=cost,
    )(x, lo, hi, *t_params)

    # Tiny head kernel: cross-core reduce + prediction MLP (everything fits in
    # VMEM whole, so no grid / BlockSpecs needed).
    head_kernel = _make_head_kernel(n_pred_layers)
    out = pl.pallas_call(
        head_kernel,
        out_shape=jax.ShapeDtypeStruct((1, b_pad), jnp.float32),
    )(pooled_parts, *c_params)

    return out[0, :B]


# --------------------------------------------------------------------------- #
# Pure-JAX reference
# --------------------------------------------------------------------------- #
def reference_forward_matched(X_list, params, n_table_layers, n_pred_layers):
    """Mirrors ComputeCostNet.forward exactly (cat -> table MLP+relu ->
    segment index_add -> pred MLP), using the kernel's precision policy:
    matmul operands rounded to bfloat16, accumulation and biases in float32.
    (The only deviation from the exact-f32 PyTorch math is this documented
    bf16 operand rounding — the perf-review-mandated MXU feed.)"""
    def mm(a, w):
        return jnp.dot(a.astype(jnp.bfloat16), w.astype(jnp.bfloat16),
                       preferred_element_type=jnp.float32)

    x = jnp.concatenate([xi.astype(jnp.float32) for xi in X_list], axis=0)
    idx = 0
    h = x
    for _ in range(n_table_layers):
        w, b = params[idx], params[idx + 1]
        idx += 2
        h = jnp.maximum(mm(h, w) + b, 0.0)
    # pooling operand is rounded to bf16 exactly like the kernel's mask matmul
    h = h.astype(jnp.bfloat16).astype(jnp.float32)

    seg = jnp.concatenate(
        [jnp.full((xi.shape[0],), i, jnp.int32) for i, xi in enumerate(X_list)]
    )
    p = jnp.zeros((len(X_list), h.shape[1]), jnp.float32).at[seg].add(h)

    for k in range(n_pred_layers):
        w, b = params[idx], params[idx + 1]
        idx += 2
        p = mm(p, w) + b
        if k != n_pred_layers - 1:
            p = jnp.maximum(p, 0.0)
    return p.reshape(len(X_list))


if __name__ == "__main__":
    # Module-consistent small config:
    #   table layers: 8->32, 32->32 ; pred layers: 32->16, 16->1
    num_table_features = 8
    table_mlp_sizes = [32, 32]
    pred_mlp_sizes = [32, 16]

    root = jax.random.PRNGKey(0)
    kp, kx = jax.random.split(root)
    params, n_t, n_c = init_params(
        kp, num_table_features, table_mlp_sizes, pred_mlp_sizes)

    # Ragged batch, B=3; total rows span multiple row tiles to exercise the
    # accumulator path.
    lengths = [3, 300, 5]
    xkeys = jax.random.split(kx, len(lengths))
    X = [jax.random.normal(k, (L, num_table_features), jnp.float32)
         for k, L in zip(xkeys, lengths)]

    ref = np.asarray(jax.block_until_ready(
        reference_forward_matched(X, params, n_t, n_c)))

    # Exercise: (a) multi-tile accumulation on one core, (b) the explicit
    # 2-core (v7x-style) partial-slab + head-reduce path (correct on any
    # hardware since "parallel" is only a hint), (c) the auto-detected default.
    for cores, tm in ((1, 256), (2, 256), (None, 1024)):
        out = compute_cost_net_forward(X, params, n_t, n_c,
                                       tm=tm, num_cores=cores)
        out = np.asarray(jax.block_until_ready(out))
        np.testing.assert_allclose(out, ref, rtol=2e-3, atol=2e-3)

    print("KERNEL_OK")
</pallas_src>

<mosaic_0001>
module attributes {stable_mosaic.version = 11 : i64} {
  func.func @kernel(%arg0: i32, %arg1: i32, %arg2: memref<256x8xbf16, #tpu.memory_space<vmem>>, %arg3: memref<8x1xi32, #tpu.memory_space<vmem>>, %arg4: memref<8x1xi32, #tpu.memory_space<vmem>>, %arg5: memref<8x128xbf16, #tpu.memory_space<vmem>>, %arg6: memref<1x128xf32, #tpu.memory_space<vmem>>, %arg7: memref<128x128xbf16, #tpu.memory_space<vmem>>, %arg8: memref<1x128xf32, #tpu.memory_space<vmem>>, %arg9: memref<1x8x128xf32, #tpu.memory_space<vmem>>) attributes {dimension_semantics = [#tpu.dimension_semantics<parallel>, #tpu.dimension_semantics<arbitrary>], iteration_bounds = array<i64: 1, 2>, scalar_prefetch = 0 : i64, scratch_operands = 0 : i64, tpu.core_type = #tpu.core_type<tc>, window_params = [{transform_indices = @transform_0, window_bounds = array<i64: 256, 8>}, {pipeline_mode = #tpu.pipeline_mode<synchronous>, transform_indices = @transform_1, window_bounds = array<i64: 8, 1>}, {pipeline_mode = #tpu.pipeline_mode<synchronous>, transform_indices = @transform_2, window_bounds = array<i64: 8, 1>}, {pipeline_mode = #tpu.pipeline_mode<synchronous>, transform_indices = @transform_3, window_bounds = array<i64: 8, 128>}, {pipeline_mode = #tpu.pipeline_mode<synchronous>, transform_indices = @transform_4, window_bounds = array<i64: 1, 128>}, {pipeline_mode = #tpu.pipeline_mode<synchronous>, transform_indices = @transform_5, window_bounds = array<i64: 128, 128>}, {pipeline_mode = #tpu.pipeline_mode<synchronous>, transform_indices = @transform_6, window_bounds = array<i64: 1, 128>}, {transform_indices = @transform_7, window_bounds = array<i64: 1, 8, 128>}]} {
    %c0_i32 = arith.constant 0 : i32
    %0 = arith.cmpi eq, %arg1, %c0_i32 : i32
    %1 = arith.extui %0 : i1 to i32
    %c0_i32_0 = arith.constant 0 : i32
    %2 = arith.cmpi ne, %1, %c0_i32_0 : i32
    scf.if %2 {
      %cst_26 = arith.constant 0.000000e+00 : f32
      %46 = vector.broadcast %cst_26 : f32 to vector<8x128xf32>
      %c0_27 = arith.constant 0 : index
      %c0_28 = arith.constant 0 : index
      %c0_29 = arith.constant 0 : index
      %47 = vector.load %arg9[%c0_27, %c0_28, %c0_29] : memref<1x8x128xf32, #tpu.memory_space<vmem>>, vector<1x8x128xf32>
      %48 = vector.shape_cast %47 : vector<1x8x128xf32> to vector<8x128xf32>
      %49 = vector.shape_cast %46 : vector<8x128xf32> to vector<1x8x128xf32>
      tpu.vector_store %arg9[%c0_27, %c0_28, %c0_29], %49 {strides = array<i32>} : memref<1x8x128xf32, #tpu.memory_space<vmem>>, vector<1x8x128xf32>,
    } else {
    }
    %c0 = arith.constant 0 : index
    %c0_1 = arith.constant 0 : index
    %3 = vector.load %arg2[%c0, %c0_1] : memref<256x8xbf16, #tpu.memory_space<vmem>>, vector<256x8xbf16>
    %c0_2 = arith.constant 0 : index
    %c0_3 = arith.constant 0 : index
    %4 = vector.load %arg5[%c0_2, %c0_3] : memref<8x128xbf16, #tpu.memory_space<vmem>>, vector<8x128xbf16>
    %c0_4 = arith.constant 0 : index
    %c0_5 = arith.constant 0 : index
    %5 = vector.load %arg6[%c0_4, %c0_5] : memref<1x128xf32, #tpu.memory_space<vmem>>, vector<1x128xf32>
    %cst = arith.constant dense<0.000000e+00> : vector<256x128xf32>
    %6 = tpu.matmul %3, %4, %cst {dimension_numbers = #tpu.dot_dimension_numbers<[1], [0], [0], [1], [0, 0, 1, 1], [], []>} : vector<256x8xbf16>, vector<8x128xbf16>, vector<256x128xf32> -> vector<256x128xf32>
    %7 = vector.broadcast %5 : vector<1x128xf32> to vector<256x128xf32>
    %8 = arith.addf %6, %7 : vector<256x128xf32>
    %cst_6 = arith.constant 0.000000e+00 : f32
    %9 = vector.broadcast %cst_6 : f32 to vector<256x128xf32>
    %10 = arith.maximumf %8, %9 : vector<256x128xf32>
    %11 = arith.truncf %10 : vector<256x128xf32> to vector<256x128xbf16>
    %c0_7 = arith.constant 0 : index
    %c0_8 = arith.constant 0 : index
    %12 = vector.load %arg7[%c0_7, %c0_8] : memref<128x128xbf16, #tpu.memory_space<vmem>>, vector<128x128xbf16>
    %c0_9 = arith.constant 0 : index
    %c0_10 = arith.constant 0 : index
    %13 = vector.load %arg8[%c0_9, %c0_10] : memref<1x128xf32, #tpu.memory_space<vmem>>, vector<1x128xf32>
    %cst_11 = arith.constant dense<0.000000e+00> : vector<256x128xf32>
    %14 = tpu.matmul %11, %12, %cst_11 {dimension_numbers = #tpu.dot_dimension_numbers<[1], [0], [0], [1], [0, 0, 1, 1], [], []>} : vector<256x128xbf16>, vector<128x128xbf16>, vector<256x128xf32> -> vector<256x128xf32>
    %15 = vector.broadcast %13 : vector<1x128xf32> to vector<256x128xf32>
    %16 = arith.addf %14, %15 : vector<256x128xf32>
    %cst_12 = arith.constant 0.000000e+00 : f32
    %17 = vector.broadcast %cst_12 : f32 to vector<256x128xf32>
    %18 = arith.maximumf %16, %17 : vector<256x128xf32>
    %19 = arith.truncf %18 : vector<256x128xf32> to vector<256x128xbf16>
    %c2_i32 = arith.constant 2 : i32
    %20 = arith.muli %arg0, %c2_i32 : i32
    %21 = arith.addi %20, %arg1 : i32
    %c256_i32 = arith.constant 256 : i32
    %22 = arith.muli %21, %c256_i32 : i32
    %23 = tpu.iota {dimensions = array<i32: 1>} : vector<1x256xi32>
    %24 = vector.broadcast %22 : i32 to vector<1x256xi32>
    %25 = arith.addi %24, %23 : vector<1x256xi32>
    %c0_13 = arith.constant 0 : index
    %c0_14 = arith.constant 0 : index
    %26 = vector.load %arg3[%c0_13, %c0_14] : memref<8x1xi32, #tpu.memory_space<vmem>>, vector<8x1xi32>
    %27 = vector.broadcast %25 : vector<1x256xi32> to vector<8x256xi32>
    %28 = vector.broadcast %26 : vector<8x1xi32> to vector<8x256xi32>
    %29 = arith.cmpi sge, %27, %28 : vector<8x256xi32>
    %c0_15 = arith.constant 0 : index
    %c0_16 = arith.constant 0 : index
    %30 = vector.load %arg4[%c0_15, %c0_16] : memref<8x1xi32, #tpu.memory_space<vmem>>, vector<8x1xi32>
    %31 = vector.broadcast %25 : vector<1x256xi32> to vector<8x256xi32>
    %32 = vector.broadcast %30 : vector<8x1xi32> to vector<8x256xi32>
    %33 = arith.cmpi slt, %31, %32 : vector<8x256xi32>
    %34 = arith.andi %29, %33 : vector<8x256xi1>
    %cst_17 = arith.constant 1.000000e+00 : f32
    %cst_18 = arith.constant 0.000000e+00 : f32
    %35 = vector.broadcast %cst_17 : f32 to vector<8x256xf32>
    %36 = vector.broadcast %cst_18 : f32 to vector<8x256xf32>
    %37 = arith.select %34, %35, %36 : vector<8x256xi1>, vector<8x256xf32>
    %38 = arith.truncf %37 : vector<8x256xf32> to vector<8x256xbf16>
    %c0_19 = arith.constant 0 : index
    %c0_20 = arith.constant 0 : index
    %c0_21 = arith.constant 0 : index
    %39 = vector.load %arg9[%c0_19, %c0_20, %c0_21] : memref<1x8x128xf32, #tpu.memory_space<vmem>>, vector<1x8x128xf32>
    %40 = vector.shape_cast %39 : vector<1x8x128xf32> to vector<8x128xf32>
    %cst_22 = arith.constant dense<0.000000e+00> : vector<8x128xf32>
    %41 = tpu.matmul %38, %19, %cst_22 {dimension_numbers = #tpu.dot_dimension_numbers<[1], [0], [0], [1], [0, 0, 1, 1], [], []>} : vector<8x256xbf16>, vector<256x128xbf16>, vector<8x128xf32> -> vector<8x128xf32>
    %42 = arith.addf %40, %41 : vector<8x128xf32>
    %c0_23 = arith.constant 0 : index
    %c0_24 = arith.constant 0 : index
    %c0_25 = arith.constant 0 : index
    %43 = vector.load %arg9[%c0_23, %c0_24, %c0_25] : memref<1x8x128xf32, #tpu.memory_space<vmem>>, vector<1x8x128xf32>
    %44 = vector.shape_cast %43 : vector<1x8x128xf32> to vector<8x128xf32>
    %45 = vector.shape_cast %42 : vector<8x128xf32> to vector<1x8x128xf32>
    tpu.vector_store %arg9[%c0_23, %c0_24, %c0_25], %45 {strides = array<i32>} : memref<1x8x128xf32, #tpu.memory_space<vmem>>, vector<1x8x128xf32>,
    return
  }
  func.func @transform_0(%arg0: i32, %arg1: i32) -> (i32, i32) {
    %c2_i32 = arith.constant 2 : i32
    %0 = arith.muli %arg0, %c2_i32 : i32
    %1 = arith.addi %0, %arg1 : i32
    %c0_i32 = arith.constant 0 : i32
    %c0_i32_0 = arith.constant 0 : i32
    return %1, %c0_i32 : i32, i32
  }
  func.func @transform_1(%arg0: i32, %arg1: i32) -> (i32, i32) {
    %c0_i32 = arith.constant 0 : i32
    %c0_i32_0 = arith.constant 0 : i32
    %c0_i32_1 = arith.constant 0 : i32
    return %c0_i32, %c0_i32_0 : i32, i32
  }
  func.func @transform_2(%arg0: i32, %arg1: i32) -> (i32, i32) {
    %c0_i32 = arith.constant 0 : i32
    %c0_i32_0 = arith.constant 0 : i32
    %c0_i32_1 = arith.constant 0 : i32
    return %c0_i32, %c0_i32_0 : i32, i32
  }
  func.func @transform_3(%arg0: i32, %arg1: i32) -> (i32, i32) {
    %c0_i32 = arith.constant 0 : i32
    %c0_i32_0 = arith.constant 0 : i32
    %c0_i32_1 = arith.constant 0 : i32
    return %c0_i32, %c0_i32_0 : i32, i32
  }
  func.func @transform_4(%arg0: i32, %arg1: i32) -> (i32, i32) {
    %c0_i32 = arith.constant 0 : i32
    %c0_i32_0 = arith.constant 0 : i32
    %c0_i32_1 = arith.constant 0 : i32
    return %c0_i32, %c0_i32_0 : i32, i32
  }
  func.func @transform_5(%arg0: i32, %arg1: i32) -> (i32, i32) {
    %c0_i32 = arith.constant 0 : i32
    %c0_i32_0 = arith.constant 0 : i32
    %c0_i32_1 = arith.constant 0 : i32
    return %c0_i32, %c0_i32_0 : i32, i32
  }
  func.func @transform_6(%arg0: i32, %arg1: i32) -> (i32, i32) {
    %c0_i32 = arith.constant 0 : i32
    %c0_i32_0 = arith.constant 0 : i32
    %c0_i32_1 = arith.constant 0 : i32
    return %c0_i32, %c0_i32_0 : i32, i32
  }
  func.func @transform_7(%arg0: i32, %arg1: i32) -> (i32, i32, i32) {
    %c0_i32 = arith.constant 0 : i32
    %c0_i32_0 = arith.constant 0 : i32
    %c0_i32_1 = arith.constant 0 : i32
    return %arg0, %c0_i32, %c0_i32_0 : i32, i32, i32
  }
}

</mosaic_0001>

<llo_original>
// kernel: tpu_custom_call.1
$region0: #{tpu_custom_call.1}
  #allocation0 [shape = 'u32[]', space=smem, size = 0x4, offset = 0x4, fixed_abs, tag = 'smem constant byte address 0x4 - core index']
  #allocation1 [shape = 'u32[144,128]{1,0:T(1,128)}', space=vmem, size = 0x12000, scoped, tag = 'internal scratch']
  %s0 = inlined_call_operand.vmem [shape: bf16[512,8], index: 0, kind: input, shape index: {}]
  %s1 = inlined_call_operand.vmem [shape: s32[8,1], index: 1, kind: input, shape index: {}]
  %s2 = inlined_call_operand.vmem [shape: s32[8,1], index: 2, kind: input, shape index: {}]
  %s3 = inlined_call_operand.vmem [shape: bf16[8,128], index: 3, kind: input, shape index: {}]
  %s4 = inlined_call_operand.vmem [shape: f32[1,128], index: 4, kind: input, shape index: {}]
  %s5 = inlined_call_operand.vmem [shape: bf16[128,128], index: 5, kind: input, shape index: {}]
  %s6 = inlined_call_operand.vmem [shape: f32[1,128], index: 6, kind: input, shape index: {}]
  %s7 = inlined_call_operand.hbm [shape: f32[1,8,128], index: 7, kind: output, shape index: {}]
  %s8 = sld [smem:[#allocation0]]
  $region65: #{tpu_custom_call.1} parent=0
    _
  %s10 = ssub.s32 1, %s8
  %s11 = scalar_select 0, %s10, %s8
  $region1: #{tpu_custom_call.1} parent=0
    #allocation2 [shape = 'u8[4096]{0}', space=vmem, size = 0x1000, scoped, tag = 'output window, operand 0, single buffered']
    #allocation3 [shape = 's32[2]{0}', space=sflag, size = 0x8, scoped, tag = 'scoped memory for tpu_custom_call.1']
    %12 = vsyncpa [#allocation3], 0
    loop: start=0, step=1, limit=4
    $region2: #{tpu_custom_call.1} parent=1 // loop_pre_header
      _
    $region3: #{tpu_custom_call.1} parent=1 // loop_header
      %s14 = sphi 0, %s18
      %p15 = scmp.ge.s32.totalorder %s14, 4
      %s21 = sphi 0, %s33
      %s22 = sphi 0, %s29
      %s23 = sphi 0, %s21
      %s24 = sphi 0, %s22
      %s25 = sphi 0, %s23
      %s26 = sphi 0, %s24
      %s40 = sphi 0, %s42
      %s43 = sphi 0, %s40
      %s44 = sphi 0, %s43
      %s60 = sphi 0, %s44
      %s64 = sphi 0, %s64
      %s66 = sphi 0, %s64
      %s67 = sphi 0, %s66
      %s81 = sphi 0, %s67
      %s85 = sphi 0, %s85
      %s87 = sphi 0, %s85
      %s88 = sphi 0, %s87
      %s102 = sphi 0, %s88
      %s106 = sphi 0, %s106
      %s108 = sphi 0, %s106
      %s109 = sphi 0, %s108
      %s123 = sphi 0, %s109
      %s127 = sphi 0, %s127
      %s129 = sphi 0, %s127
      %s130 = sphi 0, %s129
      %s144 = sphi 0, %s130
      %s148 = sphi 0, %s148
      %s150 = sphi 0, %s148
      %s151 = sphi 0, %s150
      %s165 = sphi 0, %s151
      %s169 = sphi 0, %s169
      %s171 = sphi 0, %s169
      %s172 = sphi 0, %s171
      %s186 = sphi 0, %s172
      %s192 = sphi 0, %s194
      %s195 = sphi 0, %s192
      %s196 = sphi 0, %s195
      %s212 = sphi 0, %s196
    $region4: #{tpu_custom_call.1} parent=1 // loop_header_branch
      %17 = sbr.rel (%p15) target = $region8
    $region5: #{tpu_custom_call.1} parent=1 // loop_body
      %s19 = ssub.s32 %s14, 1
      %s20 = ssub.s32 %s14, 2
      %s27 = sadd.s32 1, %s22
      %p28 = scmp.ge.s32.totalorder %s27, 2
      %s29 = scalar_select %p28, 0, %s27
      %s30 = sadd.s32 1, %s21
      %s31 = scalar_select %p28, %s30, %s21
      %p32 = scmp.ge.s32.totalorder %s31, 1
      %s33 = scalar_select %p32, 0, %s31
      %s34 = smul.u32 %s21, 2
      %s35 = sadd.s32 %s34, %s22
      %s36 = smul.u32 %s33, 2
      %s37 = sadd.s32 %s36, %s29
      %s38 = ssub.s32 %s35, %s37
      %p39 = scmp.eq.s32.totalorder %s38, 0
      %s41 = sadd.s32 %s40, 1
      %s42 = scalar_select %p39, %s40, %s41
      %p45 = pneg %p39
      %p46 = scmp.eq.s32.totalorder %s14, 1
      %p47 = por %p45, %p46
      %p48 = scmp.ne.s32.totalorder %s40, %s43
      %p49 = scmp.eq.s32.totalorder %s14, 0
      %p50 = por %p48, %p49
      %p51 = scmp.ne.s32.totalorder %s40, %s43
      %p52 = scmp.eq.s32.totalorder %s19, 1
      %p53 = por %p51, %p52
      %p54 = scmp.ne.s32.totalorder %s43, %s44
      %p55 = scmp.eq.s32.totalorder %s19, 0
      %p56 = por %p54, %p55
      %p57 = scmp.ne.s32.totalorder %s43, %s44
      %p58 = scmp.eq.s32.totalorder %s20, 1
      %p59 = por %p57, %p58
      %p61 = scmp.ne.s32.totalorder %s44, %s60
      %p62 = scmp.eq.s32.totalorder %s20, 0
      %p63 = por %p61, %p62
      %s65 = sadd.s32 %s64, 1
      %p68 = scmp.eq.s32.totalorder %s14, 1
      %p69 = scmp.ne.s32.totalorder %s64, %s66
      %p70 = scmp.eq.s32.totalorder %s14, 0
      %p71 = por %p69, %p70
      %p72 = scmp.ne.s32.totalorder %s64, %s66
      %p73 = scmp.eq.s32.totalorder %s19, 1
      %p74 = por %p72, %p73
      %p75 = scmp.ne.s32.totalorder %s66, %s67
      %p76 = scmp.eq.s32.totalorder %s19, 0
      %p77 = por %p75, %p76
      %p78 = scmp.ne.s32.totalorder %s66, %s67
      %p79 = scmp.eq.s32.totalorder %s20, 1
      %p80 = por %p78, %p79
      %p82 = scmp.ne.s32.totalorder %s67, %s81
      %p83 = scmp.eq.s32.totalorder %s20, 0
      %p84 = por %p82, %p83
      %s86 = sadd.s32 %s85, 1
      %p89 = scmp.eq.s32.totalorder %s14, 1
      %p90 = scmp.ne.s32.totalorder %s85, %s87
      %p91 = scmp.eq.s32.totalorder %s14, 0
      %p92 = por %p90, %p91
      %p93 = scmp.ne.s32.totalorder %s85, %s87
      %p94 = scmp.eq.s32.totalorder %s19, 1
      %p95 = por %p93, %p94
      %p96 = scmp.ne.s32.totalorder %s87, %s88
      %p97 = scmp.eq.s32.totalorder %s19, 0
      %p98 = por %p96, %p97
      %p99 = scmp.ne.s32.totalorder %s87, %s88
      %p100 = scmp.eq.s32.totalorder %s20, 1
      %p101 = por %p99, %p100
      %p103 = scmp.ne.s32.totalorder %s88, %s102
      %p104 = scmp.eq.s32.totalorder %s20, 0
      %p105 = por %p103, %p104
      %s107 = sadd.s32 %s106, 1
      %p110 = scmp.eq.s32.totalorder %s14, 1
      %p111 = scmp.ne.s32.totalorder %s106, %s108
      %p112 = scmp.eq.s32.totalorder %s14, 0
      %p113 = por %p111, %p112
      %p114 = scmp.ne.s32.totalorder %s106, %s108
      %p115 = scmp.eq.s32.totalorder %s19, 1
      %p116 = por %p114, %p115
      %p117 = scmp.ne.s32.totalorder %s108, %s109
      %p118 = scmp.eq.s32.totalorder %s19, 0
      %p119 = por %p117, %p118
      %p120 = scmp.ne.s32.totalorder %s108, %s109
      %p121 = scmp.eq.s32.totalorder %s20, 1
      %p122 = por %p120, %p121
      %p124 = scmp.ne.s32.totalorder %s109, %s123
      %p125 = scmp.eq.s32.totalorder %s20, 0
      %p126 = por %p124, %p125
      %s128 = sadd.s32 %s127, 1
      %p131 = scmp.eq.s32.totalorder %s14, 1
      %p132 = scmp.ne.s32.totalorder %s127, %s129
      %p133 = scmp.eq.s32.totalorder %s14, 0
      %p134 = por %p132, %p133
      %p135 = scmp.ne.s32.totalorder %s127, %s129
      %p136 = scmp.eq.s32.totalorder %s19, 1
      %p137 = por %p135, %p136
      %p138 = scmp.ne.s32.totalorder %s129, %s130
      %p139 = scmp.eq.s32.totalorder %s19, 0
      %p140 = por %p138, %p139
      %p141 = scmp.ne.s32.totalorder %s129, %s130
      %p142 = scmp.eq.s32.totalorder %s20, 1
      %p143 = por %p141, %p142
      %p145 = scmp.ne.s32.totalorder %s130, %s144
      %p146 = scmp.eq.s32.totalorder %s20, 0
      %p147 = por %p145, %p146
      %s149 = sadd.s32 %s148, 1
      %p152 = scmp.eq.s32.totalorder %s14, 1
      %p153 = scmp.ne.s32.totalorder %s148, %s150
      %p154 = scmp.eq.s32.totalorder %s14, 0
      %p155 = por %p153, %p154
      %p156 = scmp.ne.s32.totalorder %s148, %s150
      %p157 = scmp.eq.s32.totalorder %s19, 1
      %p158 = por %p156, %p157
      %p159 = scmp.ne.s32.totalorder %s150, %s151
      %p160 = scmp.eq.s32.totalorder %s19, 0
      %p161 = por %p159, %p160
      %p162 = scmp.ne.s32.totalorder %s150, %s151
      %p163 = scmp.eq.s32.totalorder %s20, 1
      %p164 = por %p162, %p163
      %p166 = scmp.ne.s32.totalorder %s151, %s165
      %p167 = scmp.eq.s32.totalorder %s20, 0
      %p168 = por %p166, %p167
      %s170 = sadd.s32 %s169, 1
      %p173 = scmp.eq.s32.totalorder %s14, 1
      %p174 = scmp.ne.s32.totalorder %s169, %s171
      %p175 = scmp.eq.s32.totalorder %s14, 0
      %p176 = por %p174, %p175
      %p177 = scmp.ne.s32.totalorder %s169, %s171
      %p178 = scmp.eq.s32.totalorder %s19, 1
      %p179 = por %p177, %p178
      %p180 = scmp.ne.s32.totalorder %s171, %s172
      %p181 = scmp.eq.s32.totalorder %s19, 0
      %p182 = por %p180, %p181
      %p183 = scmp.ne.s32.totalorder %s171, %s172
      %p184 = scmp.eq.s32.totalorder %s20, 1
      %p185 = por %p183, %p184
      %p187 = scmp.ne.s32.totalorder %s172, %s186
      %p188 = scmp.eq.s32.totalorder %s20, 0
      %p189 = por %p187, %p188
      %s190 = ssub.s32 %s21, %s33
      %p191 = scmp.eq.s32.totalorder %s190, 0
      %s193 = sadd.s32 %s192, 1
      %s194 = scalar_select %p191, %s192, %s193
      %p197 = pneg %p191
      %p198 = scmp.eq.s32.totalorder %s14, 1
      %p199 = por %p197, %p198
      %p200 = scmp.ne.s32.totalorder %s192, %s195
      %p201 = scmp.eq.s32.totalorder %s14, 0
      %p202 = por %p200, %p201
      %p203 = scmp.ne.s32.totalorder %s192, %s195
      %p204 = scmp.eq.s32.totalorder %s19, 1
      %p205 = por %p203, %p204
      %p206 = scmp.ne.s32.totalorder %s195, %s196
      %p207 = scmp.eq.s32.totalorder %s19, 0
      %p208 = por %p206, %p207
      %p209 = scmp.ne.s32.totalorder %s195, %s196
      %p210 = scmp.eq.s32.totalorder %s20, 1
      %p211 = por %p209, %p210
      %p213 = scmp.ne.s32.totalorder %s196, %s212
      %p214 = scmp.eq.s32.totalorder %s20, 0
      %p215 = por %p213, %p214
      %p216 = scmp.le.s32.totalorder 1, %s14
      %p217 = scmp.lt.s32.totalorder %s14, 3
      %p218 = pnand %p216, %p217
      %p219 = pneg %p218
      // Predicated region
      $region9: #{tpu_custom_call.1} parent=5 // pred_check
        _
      $region10: #{tpu_custom_call.1} parent=5 // pred_check_branch
        %221 = sbr.rel (%p218) target = $region12
      $region11: #{tpu_custom_call.1} parent=5 // pred_region
        %s222 = ssub.s32 %s14, 1
        // Predicated region
        $region13: #{tpu_custom_call.1} parent=11 // pred_check
          %p223 = pneg %p77
        $region14: #{tpu_custom_call.1} parent=11 // pred_check_branch
          %225 = sbr.rel (%p223) target = $region16
        $region15: #{tpu_custom_call.1} parent=11 // pred_region
          _
        $region16: #{tpu_custom_call.1} parent=11 // pred_fallthru
          _
        // Predicated region
        $region17: #{tpu_custom_call.1} parent=11 // pred_check
          %p226 = pneg %p98
        $region18: #{tpu_custom_call.1} parent=11 // pred_check_branch
          %228 = sbr.rel (%p226) target = $region20
        $region19: #{tpu_custom_call.1} parent=11 // pred_region
          _
        $region20: #{tpu_custom_call.1} parent=11 // pred_fallthru
          _
        // Predicated region
        $region21: #{tpu_custom_call.1} parent=11 // pred_check
          %p229 = pneg %p119
        $region22: #{tpu_custom_call.1} parent=11 // pred_check_branch
          %231 = sbr.rel (%p229) target = $region24
        $region23: #{tpu_custom_call.1} parent=11 // pred_region
          _
        $region24: #{tpu_custom_call.1} parent=11 // pred_fallthru
          _
        // Predicated region
        $region25: #{tpu_custom_call.1} parent=11 // pred_check
          %p232 = pneg %p140
        $region26: #{tpu_custom_call.1} parent=11 // pred_check_branch
          %234 = sbr.rel (%p232) target = $region28
        $region27: #{tpu_custom_call.1} parent=11 // pred_region
          _
        $region28: #{tpu_custom_call.1} parent=11 // pred_fallthru
          _
        // Predicated region
        $region29: #{tpu_custom_call.1} parent=11 // pred_check
          %p235 = pneg %p161
        $region30: #{tpu_custom_call.1} parent=11 // pred_check_branch
          %237 = sbr.rel (%p235) target = $region32
        $region31: #{tpu_custom_call.1} parent=11 // pred_region
          _
        $region32: #{tpu_custom_call.1} parent=11 // pred_fallthru
          _
        // Predicated region
        $region33: #{tpu_custom_call.1} parent=11 // pred_check
          %p238 = pneg %p182
        $region34: #{tpu_custom_call.1} parent=11 // pred_check_branch
          %240 = sbr.rel (%p238) target = $region36
        $region35: #{tpu_custom_call.1} parent=11 // pred_region
          _
        $region36: #{tpu_custom_call.1} parent=11 // pred_fallthru
          _
      $region12: #{tpu_custom_call.1} parent=5 // pred_fallthru
        _
      %p241 = scmp.lt.s32.totalorder %s14, 2
      // Predicated region
      $region37: #{tpu_custom_call.1} parent=5 // pred_check
        %p242 = pneg %p241
      $region38: #{tpu_custom_call.1} parent=5 // pred_check_branch
        %244 = sbr.rel (%p242) target = $region40
      $region39: #{tpu_custom_call.1} parent=5 // pred_region
        // Predicated region
        $region41: #{tpu_custom_call.1} parent=39 // pred_check
          %p245 = pneg %p50
        $region42: #{tpu_custom_call.1} parent=39 // pred_check_branch
          %247 = sbr.rel (%p245) target = $region44
        $region43: #{tpu_custom_call.1} parent=39 // pred_region
          %s248 = smul.u32 %s21, 2
          %s249 = sadd.s32 %s248, %s22
          %s250 = smul.u32 32, %s249
          %p251 = scmp.lt.s32.totalorder %s250, 63
          %s252 = scalar_select %p251, %s250, 63
          %s253 = smul.addr %s252, 4
          %s254 = scalar_lea.vmem %s0, %s253
          %s255 = smul.u32 %s21, 2
          %s256 = sadd.s32 %s255, %s22
          %s257 = smul.u32 32, %s256
        $region44: #{tpu_custom_call.1} parent=39 // pred_fallthru
          _
      $region40: #{tpu_custom_call.1} parent=5 // pred_fallthru
        _
      %p258 = scmp.le.s32.totalorder 1, %s14
      %p259 = scmp.lt.s32.totalorder %s14, 3
      %p260 = pnand %p258, %p259
      %p261 = pneg %p260
      // Predicated region
      $region45: #{tpu_custom_call.1} parent=5 // pred_check
        _
      $region46: #{tpu_custom_call.1} parent=5 // pred_check_branch
        %263 = sbr.rel (%p260) target = $region48
      $region47: #{tpu_custom_call.1} parent=5 // pred_region
        %s264 = ssub.s32 %s14, 1
        %s265 = smul.u32 %s23, 2
        %s266 = sadd.s32 %s265, %s24
        %s267 = smul.u32 32, %s266
        %p268 = scmp.lt.s32.totalorder %s267, 63
        %s269 = scalar_select %p268, %s267, 63
        %s270 = smul.addr %s269, 4
        %s271 = scalar_lea.vmem %s0, %s270
        %p272 = pneg %p56
        %p273 = pneg %p53
        %p274 = pneg %p77
        %p275 = pneg %p74
        %p276 = pneg %p98
        %p277 = pneg %p95
        %p278 = pneg %p119
        %p279 = pneg %p116
        %p280 = pneg %p140
        %p281 = pneg %p137
        %p282 = pneg %p161
        %p283 = pneg %p158
        %p284 = pneg %p182
        %p285 = pneg %p179
        %p286 = pneg %p208
        %p287 = pneg %p205
        %s288 = smul.u32 %s23, 2
        %s289 = sadd.s32 %s288, %s24
        %s290 = smul.u32 32, %s289
        %p291 = scmp.lt.s32.totalorder %s290, 63
        %s292 = scalar_select %p291, %s290, 63
        %s293 = smul.addr %s292, 4
        %s294 = scalar_lea.vmem %s0, %s293
        %s295 = smul.u32 %s23, 2
        %s296 = sadd.s32 %s295, %s24
        %s297 = smul.u32 32, %s296
        %p299 = scmp.eq.s32.totalorder %s24, 0
        // Predicated region
        $region49: #{tpu_custom_call.1} parent=47 // pred_check
          %p300 = pneg %p299
        $region50: #{tpu_custom_call.1} parent=47 // pred_check_branch
          %302 = sbr.rel (%p300) target = $region52
        $region51: #{tpu_custom_call.1} parent=47 // pred_region
          %303 = vst [vmem:[#allocation2] sm:$0xff] 0.0
        $region52: #{tpu_custom_call.1} parent=47 // pred_fallthru
          _
        %v304 = vld [vmem:[%s294] sm:$0xf]
        %v305 = vld [vmem:[%s294 + $0x4] sm:$0xf]
        %v306 = vld [vmem:[%s294 + $0x8] sm:$0xf]
        %v307 = vld [vmem:[%s294 + $0xc] sm:$0xf]
        %v308 = vld [vmem:[%s294 + $0x10] sm:$0xf]
        %v309 = vld [vmem:[%s294 + $0x14] sm:$0xf]
        %v310 = vld [vmem:[%s294 + $0x18] sm:$0xf]
        %v311 = vld [vmem:[%s294 + $0x1c] sm:$0xf]
        %v312 = vld [vmem:[%s294 + $0x20] sm:$0xf]
        %v313 = vld [vmem:[%s294 + $0x24] sm:$0xf]
        %v314 = vld [vmem:[%s294 + $0x28] sm:$0xf]
        %v315 = vld [vmem:[%s294 + $0x2c] sm:$0xf]
        %v316 = vld [vmem:[%s294 + $0x30] sm:$0xf]
        %v317 = vld [vmem:[%s294 + $0x34] sm:$0xf]
        %v318 = vld [vmem:[%s294 + $0x38] sm:$0xf]
        %v319 = vld [vmem:[%s294 + $0x3c] sm:$0xf]
        %v320 = vld [vmem:[%s294 + $0x40] sm:$0xf]
        %v321 = vld [vmem:[%s294 + $0x44] sm:$0xf]
        %v322 = vld [vmem:[%s294 + $0x48] sm:$0xf]
        %v323 = vld [vmem:[%s294 + $0x4c] sm:$0xf]
        %v324 = vld [vmem:[%s294 + $0x50] sm:$0xf]
        %v325 = vld [vmem:[%s294 + $0x54] sm:$0xf]
        %v326 = vld [vmem:[%s294 + $0x58] sm:$0xf]
        %v327 = vld [vmem:[%s294 + $0x5c] sm:$0xf]
        %v328 = vld [vmem:[%s294 + $0x60] sm:$0xf]
        %v329 = vld [vmem:[%s294 + $0x64] sm:$0xf]
        %v330 = vld [vmem:[%s294 + $0x68] sm:$0xf]
        %v331 = vld [vmem:[%s294 + $0x6c] sm:$0xf]
        %v332 = vld [vmem:[%s294 + $0x70] sm:$0xf]
        %v333 = vld [vmem:[%s294 + $0x74] sm:$0xf]
        %v334 = vld [vmem:[%s294 + $0x78] sm:$0xf]
        %v335 = vld [vmem:[%s294 + $0x7c] sm:$0xf]
        %v336 = vld [vmem:[%s3] sm:$0xf]
        %v337 = vld [vmem:[%s4] sm:$0x1]
        %v339 = vlaneseq
        %v340 = vshrl.u32 %v339, 7
        %v341 = vsub.s32 0, %v340
        %v342 = vrot.slane %v337, %v341
        %v376 = vunpack.c.l.b16 %v304
        %v377 = vunpack.c.l.b16 %v305
        %v378 = vunpack.c.l.b16 %v306
        %v379 = vunpack.c.l.b16 %v307
        %v380 = vunpack.c.l.b16 %v308
        %v381 = vunpack.c.l.b16 %v309
        %v382 = vunpack.c.l.b16 %v310
        %v383 = vunpack.c.l.b16 %v311
        %v384 = vunpack.c.l.b16 %v312
        %v385 = vunpack.c.l.b16 %v313
        %v386 = vunpack.c.l.b16 %v314
        %v387 = vunpack.c.l.b16 %v315
        %v388 = vunpack.c.l.b16 %v316
        %v389 = vunpack.c.l.b16 %v317
        %v390 = vunpack.c.l.b16 %v318
        %v391 = vunpack.c.l.b16 %v319
        %v392 = vunpack.c.l.b16 %v320
        %v393 = vunpack.c.l.b16 %v321
        %v394 = vunpack.c.l.b16 %v322
        %v395 = vunpack.c.l.b16 %v323
        %v396 = vunpack.c.l.b16 %v324
        %v397 = vunpack.c.l.b16 %v325
        %v398 = vunpack.c.l.b16 %v326
        %v399 = vunpack.c.l.b16 %v327
        %v400 = vunpack.c.l.b16 %v328
        %v401 = vunpack.c.l.b16 %v329
        %v402 = vunpack.c.l.b16 %v330
        %v403 = vunpack.c.l.b16 %v331
        %v404 = vunpack.c.l.b16 %v332
        %v405 = vunpack.c.l.b16 %v333
        %v406 = vunpack.c.l.b16 %v334
        %v407 = vunpack.c.l.b16 %v335
        %v408 = vpack.c.b16 %v377, %v376
        %v409 = vpack.c.b16 %v379, %v378
        %v410 = vpack.c.b16 %v381, %v380
        %v411 = vpack.c.b16 %v383, %v382
        %v412 = vpack.c.b16 %v385, %v384
        %v413 = vpack.c.b16 %v387, %v386
        %v414 = vpack.c.b16 %v389, %v388
        %v415 = vpack.c.b16 %v391, %v390
        %v416 = vpack.c.b16 %v393, %v392
        %v417 = vpack.c.b16 %v395, %v394
        %v418 = vpack.c.b16 %v397, %v396
        %v419 = vpack.c.b16 %v399, %v398
        %v420 = vpack.c.b16 %v401, %v400
        %v421 = vpack.c.b16 %v403, %v402
        %v422 = vpack.c.b16 %v405, %v404
        %v423 = vpack.c.b16 %v407, %v406
        %vm424 = vcmask 64512
        %v426 = vsel %vm424, %v408, 0
        %v429 = vsel %vm424, %v409, 0
        %v432 = vsel %vm424, %v410, 0
        %v435 = vsel %vm424, %v411, 0
        %v438 = vsel %vm424, %v412, 0
        %v441 = vsel %vm424, %v413, 0
        %v444 = vsel %vm424, %v414, 0
        %v447 = vsel %vm424, %v415, 0
        %v450 = vsel %vm424, %v416, 0
        %v453 = vsel %vm424, %v417, 0
        %v456 = vsel %vm424, %v418, 0
        %v459 = vsel %vm424, %v419, 0
        %v462 = vsel %vm424, %v420, 0
        %v465 = vsel %vm424, %v421, 0
        %v468 = vsel %vm424, %v422, 0
        %v471 = vsel %vm424, %v423, 0
        %vm473 = vcmask 1043456
        %v475 = vsel %vm473, %v336, 0
        %477 = vmatprep.subr.bf16.mxu0 0
        %478 = vmatpush1.bf16.msra.mxu0 %v475
        %479 = vmatprep.subr.bf16.mxu0 0
        %480 = vmatpush1.bf16.msra.mxu0 0
        %481 = vmatprep.subr.bf16.mxu0 0
        %482 = vmatpush1.bf16.msra.mxu0 0
        %483 = vmatprep.subr.bf16.mxu0 0
        %484 = vmatpush1.bf16.msra.mxu0 0
        %485 = vmatprep.subr.bf16.mxu0 0
        %486 = vmatpush1.bf16.msra.mxu0 0
        %487 = vmatprep.subr.bf16.mxu0 0
        %488 = vmatpush1.bf16.msra.mxu0 0
        %489 = vmatprep.subr.bf16.mxu0 0
        %490 = vmatpush1.bf16.msra.mxu0 0
        %491 = vmatprep.subr.bf16.mxu0 0
        %492 = vmatpush1.bf16.msra.mxu0 0
        %493 = vmatprep.subr.bf16.mxu0 0
        %494 = vmatpush1.bf16.msra.mxu0 0
        %495 = vmatprep.subr.bf16.mxu0 0
        %496 = vmatpush1.bf16.msra.mxu0 0
        %497 = vmatprep.subr.bf16.mxu0 0
        %498 = vmatpush1.bf16.msra.mxu0 0
        %499 = vmatprep.subr.bf16.mxu0 0
        %500 = vmatpush1.bf16.msra.mxu0 0
        %501 = vmatprep.subr.bf16.mxu0 0
        %502 = vmatpush1.bf16.msra.mxu0 0
        %503 = vmatprep.subr.bf16.mxu0 0
        %504 = vmatpush1.bf16.msra.mxu0 0
        %505 = vmatprep.subr.bf16.mxu0 0
        %506 = vmatpush1.bf16.msra.mxu0 0
        %507 = vmatprep.subr.bf16.mxu0 0
        %508 = vmatpush1.bf16.msra.mxu0 0
        %509 = vmatprep.mubr.bf16.mxu0 0
        %510 = vmatmul.mubr.bf16.gmra.mrb[0].mxu0 %v426
        %v511 = vpop.f32.mrb[0].mxu0
        %v512 = vadd.f32 %v342, %v511
        %v513 = vpop.f32.mrb[0].mxu0
        %v514 = vpop.f32.mrb[0].mxu0
        %v515 = vadd.f32 %v342, %v514
        %v516 = vpop.f32.mrb[0].mxu0
        %517 = vmatprep.mubr.bf16.mxu0 0
        %518 = vmatmul.mubr.bf16.gmra.mrb[0].mxu0 %v429
        %v519 = vpop.f32.mrb[0].mxu0
        %v520 = vadd.f32 %v342, %v519
        %v521 = vpop.f32.mrb[0].mxu0
        %v522 = vpop.f32.mrb[0].mxu0
        %v523 = vadd.f32 %v342, %v522
        %v524 = vpop.f32.mrb[0].mxu0
        %525 = vmatprep.mubr.bf16.mxu0 0
        %526 = vmatmul.mubr.bf16.gmra.mrb[0].mxu0 %v432
        %v527 = vpop.f32.mrb[0].mxu0
        %v528 = vadd.f32 %v342, %v527
        %v529 = vpop.f32.mrb[0].mxu0
        %v530 = vpop.f32.mrb[0].mxu0
        %v531 = vadd.f32 %v342, %v530
        %v532 = vpop.f32.mrb[0].mxu0
        %533 = vmatprep.mubr.bf16.mxu0 0
        %534 = vmatmul.mubr.bf16.gmra.mrb[0].mxu0 %v435
        %v535 = vpop.f32.mrb[0].mxu0
        %v536 = vadd.f32 %v342, %v535
        %v537 = vpop.f32.mrb[0].mxu0
        %v538 = vpop.f32.mrb[0].mxu0
        %v539 = vadd.f32 %v342, %v538
        %v540 = vpop.f32.mrb[0].mxu0
        %541 = vmatprep.mubr.bf16.mxu0 0
        %542 = vmatmul.mubr.bf16.gmra.mrb[0].mxu0 %v438
        %v543 = vpop.f32.mrb[0].mxu0
        %v544 = vadd.f32 %v342, %v543
        %v545 = vpop.f32.mrb[0].mxu0
        %v546 = vpop.f32.mrb[0].mxu0
        %v547 = vadd.f32 %v342, %v546
        %v548 = vpop.f32.mrb[0].mxu0
        %549 = vmatprep.mubr.bf16.mxu0 0
        %550 = vmatmul.mubr.bf16.gmra.mrb[0].mxu0 %v441
        %v551 = vpop.f32.mrb[0].mxu0
        %v552 = vadd.f32 %v342, %v551
        %v553 = vpop.f32.mrb[0].mxu0
        %v554 = vpop.f32.mrb[0].mxu0
        %v555 = vadd.f32 %v342, %v554
        %v556 = vpop.f32.mrb[0].mxu0
        %557 = vmatprep.mubr.bf16.mxu0 0
        %558 = vmatmul.mubr.bf16.gmra.mrb[0].mxu0 %v444
        %v559 = vpop.f32.mrb[0].mxu0
        %v560 = vadd.f32 %v342, %v559
        %v561 = vpop.f32.mrb[0].mxu0
        %v562 = vpop.f32.mrb[0].mxu0
        %v563 = vadd.f32 %v342, %v562
        %v564 = vpop.f32.mrb[0].mxu0
        %565 = vmatprep.mubr.bf16.mxu0 0
        %566 = vmatmul.mubr.bf16.gmra.mrb[0].mxu0 %v447
        %v567 = vpop.f32.mrb[0].mxu0
        %v568 = vadd.f32 %v342, %v567
        %v569 = vpop.f32.mrb[0].mxu0
        %v570 = vpop.f32.mrb[0].mxu0
        %v571 = vadd.f32 %v342, %v570
        %v572 = vpop.f32.mrb[0].mxu0
        %573 = vmatprep.mubr.bf16.mxu0 0
        %574 = vmatmul.mubr.bf16.gmra.mrb[0].mxu0 %v450
        %v575 = vpop.f32.mrb[0].mxu0
        %v576 = vadd.f32 %v342, %v575
        %v577 = vpop.f32.mrb[0].mxu0
        %v578 = vpop.f32.mrb[0].mxu0
        %v579 = vadd.f32 %v342, %v578
        %v580 = vpop.f32.mrb[0].mxu0
        %581 = vmatprep.mubr.bf16.mxu0 0
        %582 = vmatmul.mubr.bf16.gmra.mrb[0].mxu0 %v453
        %v583 = vpop.f32.mrb[0].mxu0
        %v584 = vadd.f32 %v342, %v583
        %v585 = vpop.f32.mrb[0].mxu0
        %v586 = vpop.f32.mrb[0].mxu0
        %v587 = vadd.f32 %v342, %v586
        %v588 = vpop.f32.mrb[0].mxu0
        %589 = vmatprep.mubr.bf16.mxu0 0
        %590 = vmatmul.mubr.bf16.gmra.mrb[0].mxu0 %v456
        %v591 = vpop.f32.mrb[0].mxu0
        %v592 = vadd.f32 %v342, %v591
        %v593 = vpop.f32.mrb[0].mxu0
        %v594 = vpop.f32.mrb[0].mxu0
        %v595 = vadd.f32 %v342, %v594
        %v596 = vpop.f32.mrb[0].mxu0
        %597 = vmatprep.mubr.bf16.mxu0 0
        %598 = vmatmul.mubr.bf16.gmra.mrb[0].mxu0 %v459
        %v599 = vpop.f32.mrb[0].mxu0
        %v600 = vadd.f32 %v342, %v599
        %v601 = vpop.f32.mrb[0].mxu0
        %v602 = vpop.f32.mrb[0].mxu0
        %v603 = vadd.f32 %v342, %v602
        %v604 = vpop.f32.mrb[0].mxu0
        %605 = vmatprep.mubr.bf16.mxu0 0
        %606 = vmatmul.mubr.bf16.gmra.mrb[0].mxu0 %v462
        %v607 = vpop.f32.mrb[0].mxu0
        %v608 = vadd.f32 %v342, %v607
        %v609 = vpop.f32.mrb[0].mxu0
        %v610 = vpop.f32.mrb[0].mxu0
        %v611 = vadd.f32 %v342, %v610
        %v612 = vpop.f32.mrb[0].mxu0
        %613 = vmatprep.mubr.bf16.mxu0 0
        %614 = vmatmul.mubr.bf16.gmra.mrb[0].mxu0 %v465
        %v615 = vpop.f32.mrb[0].mxu0
        %v616 = vadd.f32 %v342, %v615
        %v617 = vpop.f32.mrb[0].mxu0
        %v618 = vpop.f32.mrb[0].mxu0
        %v619 = vadd.f32 %v342, %v618
        %v620 = vpop.f32.mrb[0].mxu0
        %621 = vmatprep.mubr.bf16.mxu0 0
        %622 = vmatmul.mubr.bf16.gmra.mrb[0].mxu0 %v468
        %v623 = vpop.f32.mrb[0].mxu0
        %v624 = vadd.f32 %v342, %v623
        %v625 = vpop.f32.mrb[0].mxu0
        %v626 = vpop.f32.mrb[0].mxu0
        %v627 = vadd.f32 %v342, %v626
        %v628 = vpop.f32.mrb[0].mxu0
        %629 = vmatprep.mubr.bf16.mxu0 0
        %630 = vmatmul.mubr.bf16.gmra.mrb[0].mxu0 %v471
        %v631 = vpop.f32.mrb[0].mxu0
        %v632 = vadd.f32 %v342, %v631
        %v633 = vpop.f32.mrb[0].mxu0
        %v634 = vpop.f32.mrb[0].mxu0
        %v635 = vadd.f32 %v342, %v634
        %v636 = vpop.f32.mrb[0].mxu0
        %637 = vdwg.mxu0
        %v638 = vmax.f32 %v512, 0.0
        %v639 = vmax.f32 %v515, 0.0
        %v640 = vmax.f32 %v520, 0.0
        %v641 = vmax.f32 %v523, 0.0
        %v642 = vmax.f32 %v528, 0.0
        %v643 = vmax.f32 %v531, 0.0
        %v644 = vmax.f32 %v536, 0.0
        %v645 = vmax.f32 %v539, 0.0
        %v646 = vmax.f32 %v544, 0.0
        %v647 = vmax.f32 %v547, 0.0
        %v648 = vmax.f32 %v552, 0.0
        %v649 = vmax.f32 %v555, 0.0
        %v650 = vmax.f32 %v560, 0.0
        %v651 = vmax.f32 %v563, 0.0
        %v652 = vmax.f32 %v568, 0.0
        %v653 = vmax.f32 %v571, 0.0
        %v654 = vmax.f32 %v576, 0.0
        %v655 = vmax.f32 %v579, 0.0
        %v656 = vmax.f32 %v584, 0.0
        %v657 = vmax.f32 %v587, 0.0
        %v658 = vmax.f32 %v592, 0.0
        %v659 = vmax.f32 %v595, 0.0
        %v660 = vmax.f32 %v600, 0.0
        %v661 = vmax.f32 %v603, 0.0
        %v662 = vmax.f32 %v608, 0.0
        %v663 = vmax.f32 %v611, 0.0
        %v664 = vmax.f32 %v616, 0.0
        %v665 = vmax.f32 %v619, 0.0
        %v666 = vmax.f32 %v624, 0.0
        %v667 = vmax.f32 %v627, 0.0
        %v668 = vmax.f32 %v632, 0.0
        %v669 = vmax.f32 %v635, 0.0
        %v670 = vpack.c.bf16 %v639, %v638
        %v671 = vpack.c.bf16 %v641, %v640
        %v672 = vpack.c.bf16 %v643, %v642
        %v673 = vpack.c.bf16 %v645, %v644
        %v674 = vpack.c.bf16 %v647, %v646
        %v675 = vpack.c.bf16 %v649, %v648
        %v676 = vpack.c.bf16 %v651, %v650
        %v677 = vpack.c.bf16 %v653, %v652
        %v678 = vpack.c.bf16 %v655, %v654
        %v679 = vpack.c.bf16 %v657, %v656
        %v680 = vpack.c.bf16 %v659, %v658
        %v681 = vpack.c.bf16 %v661, %v660
        %v682 = vpack.c.bf16 %v663, %v662
        %v683 = vpack.c.bf16 %v665, %v664
        %v684 = vpack.c.bf16 %v667, %v666
        %v685 = vpack.c.bf16 %v669, %v668
        %v686 = vld [vmem:[%s5] sm:$0xf]
        %v687 = vld [vmem:[%s5 + $0x4] sm:$0xf]
        %v688 = vld [vmem:[%s5 + $0x8] sm:$0xf]
        %v689 = vld [vmem:[%s5 + $0xc] sm:$0xf]
        %v690 = vld [vmem:[%s5 + $0x10] sm:$0xf]
        %v691 = vld [vmem:[%s5 + $0x14] sm:$0xf]
        %v692 = vld [vmem:[%s5 + $0x18] sm:$0xf]
        %v693 = vld [vmem:[%s5 + $0x1c] sm:$0xf]
        %v694 = vld [vmem:[%s5 + $0x20] sm:$0xf]
        %v695 = vld [vmem:[%s5 + $0x24] sm:$0xf]
        %v696 = vld [vmem:[%s5 + $0x28] sm:$0xf]
        %v697 = vld [vmem:[%s5 + $0x2c] sm:$0xf]
        %v698 = vld [vmem:[%s5 + $0x30] sm:$0xf]
        %v699 = vld [vmem:[%s5 + $0x34] sm:$0xf]
        %v700 = vld [vmem:[%s5 + $0x38] sm:$0xf]
        %v701 = vld [vmem:[%s5 + $0x3c] sm:$0xf]
        %v702 = vld [vmem:[%s6] sm:$0x1]
        %v704 = vlaneseq
        %v705 = vshrl.u32 %v704, 7
        %v706 = vsub.s32 0, %v705
        %v707 = vrot.slane %v702, %v706
        %v725 = vunpack.c.l.b16 %v686
        %v726 = vunpack.c.l.b16 %v687
        %v727 = vunpack.c.l.b16 %v688
        %v728 = vunpack.c.l.b16 %v689
        %v729 = vunpack.c.l.b16 %v690
        %v730 = vunpack.c.l.b16 %v691
        %v731 = vunpack.c.l.b16 %v692
        %v732 = vunpack.c.l.b16 %v693
        %v733 = vunpack.c.l.b16 %v694
        %v734 = vunpack.c.l.b16 %v695
        %v735 = vunpack.c.l.b16 %v696
        %v736 = vunpack.c.l.b16 %v697
        %v737 = vunpack.c.l.b16 %v698
        %v738 = vunpack.c.l.b16 %v699
        %v739 = vunpack.c.l.b16 %v700
        %v740 = vunpack.c.l.b16 %v701
        %v741 = vpack.c.b16 %v726, %v725
        %v742 = vpack.c.b16 %v728, %v727
        %v743 = vpack.c.b16 %v730, %v729
        %v744 = vpack.c.b16 %v732, %v731
        %v745 = vpack.c.b16 %v734, %v733
        %v746 = vpack.c.b16 %v736, %v735
        %v747 = vpack.c.b16 %v738, %v737
        %v748 = vpack.c.b16 %v740, %v739
        %757 = vmatprep.subr.bf16.mxu0 0
        %758 = vmatpush1.bf16.msra.mxu0 %v741
        %759 = vmatprep.subr.bf16.mxu0 0
        %760 = vmatpush1.bf16.msra.mxu0 %v742
        %761 = vmatprep.subr.bf16.mxu0 0
        %762 = vmatpush1.bf16.msra.mxu0 %v743
        %763 = vmatprep.subr.bf16.mxu0 0
        %764 = vmatpush1.bf16.msra.mxu0 %v744
        %765 = vmatprep.subr.bf16.mxu0 0
        %766 = vmatpush1.bf16.msra.mxu0 %v745
        %767 = vmatprep.subr.bf16.mxu0 0
        %768 = vmatpush1.bf16.msra.mxu0 %v746
        %769 = vmatprep.subr.bf16.mxu0 0
        %770 = vmatpush1.bf16.msra.mxu0 %v747
        %771 = vmatprep.subr.bf16.mxu0 0
        %772 = vmatpush1.bf16.msra.mxu0 %v748
        %773 = vmatprep.subr.bf16.mxu0 0
        %774 = vmatpush1.bf16.msra.mxu0 0
        %775 = vmatprep.subr.bf16.mxu0 0
        %776 = vmatpush1.bf16.msra.mxu0 0
        %777 = vmatprep.subr.bf16.mxu0 0
        %778 = vmatpush1.bf16.msra.mxu0 0
        %779 = vmatprep.subr.bf16.mxu0 0
        %780 = vmatpush1.bf16.msra.mxu0 0
        %781 = vmatprep.subr.bf16.mxu0 0
        %782 = vmatpush1.bf16.msra.mxu0 0
        %783 = vmatprep.subr.bf16.mxu0 0
        %784 = vmatpush1.bf16.msra.mxu0 0
        %785 = vmatprep.subr.bf16.mxu0 0
        %786 = vmatpush1.bf16.msra.mxu0 0
        %787 = vmatprep.subr.bf16.mxu0 0
        %788 = vmatpush1.bf16.msra.mxu0 0
        %789 = vmatprep.mubr.bf16.mxu0 0
        %790 = vmatmul.mubr.bf16.gmra.mrb[0].mxu0 %v670
        %v791 = vpop.f32.mrb[0].mxu0
        %v792 = vadd.f32 %v707, %v791
        %v793 = vpop.f32.mrb[0].mxu0
        %v794 = vpop.f32.mrb[0].mxu0
        %v795 = vadd.f32 %v707, %v794
        %v796 = vpop.f32.mrb[0].mxu0
        %797 = vmatprep.mubr.bf16.mxu0 0
        %798 = vmatmul.mubr.bf16.gmra.mrb[0].mxu0 %v671
        %v799 = vpop.f32.mrb[0].mxu0
        %v800 = vadd.f32 %v707, %v799
        %v801 = vpop.f32.mrb[0].mxu0
        %v802 = vpop.f32.mrb[0].mxu0
        %v803 = vadd.f32 %v707, %v802
        %v804 = vpop.f32.mrb[0].mxu0
        %805 = vmatprep.mubr.bf16.mxu0 0
        %806 = vmatmul.mubr.bf16.gmra.mrb[0].mxu0 %v672
        %v807 = vpop.f32.mrb[0].mxu0
        %v808 = vadd.f32 %v707, %v807
        %v809 = vpop.f32.mrb[0].mxu0
        %v810 = vpop.f32.mrb[0].mxu0
        %v811 = vadd.f32 %v707, %v810
        %v812 = vpop.f32.mrb[0].mxu0
        %813 = vmatprep.mubr.bf16.mxu0 0
        %814 = vmatmul.mubr.bf16.gmra.mrb[0].mxu0 %v673
        %v815 = vpop.f32.mrb[0].mxu0
        %v816 = vadd.f32 %v707, %v815
        %v817 = vpop.f32.mrb[0].mxu0
        %v818 = vpop.f32.mrb[0].mxu0
        %v819 = vadd.f32 %v707, %v818
        %v820 = vpop.f32.mrb[0].mxu0
        %821 = vmatprep.mubr.bf16.mxu0 0
        %822 = vmatmul.mubr.bf16.gmra.mrb[0].mxu0 %v674
        %v823 = vpop.f32.mrb[0].mxu0
        %v824 = vadd.f32 %v707, %v823
        %v825 = vpop.f32.mrb[0].mxu0
        %v826 = vpop.f32.mrb[0].mxu0
        %v827 = vadd.f32 %v707, %v826
        %v828 = vpop.f32.mrb[0].mxu0
        %829 = vmatprep.mubr.bf16.mxu0 0
        %830 = vmatmul.mubr.bf16.gmra.mrb[0].mxu0 %v675
        %v831 = vpop.f32.mrb[0].mxu0
        %v832 = vadd.f32 %v707, %v831
        %v833 = vpop.f32.mrb[0].mxu0
        %v834 = vpop.f32.mrb[0].mxu0
        %v835 = vadd.f32 %v707, %v834
        %v836 = vpop.f32.mrb[0].mxu0
        %837 = vmatprep.mubr.bf16.mxu0 0
        %838 = vmatmul.mubr.bf16.gmra.mrb[0].mxu0 %v676
        %v839 = vpop.f32.mrb[0].mxu0
        %v840 = vadd.f32 %v707, %v839
        %v841 = vpop.f32.mrb[0].mxu0
        %v842 = vpop.f32.mrb[0].mxu0
        %v843 = vadd.f32 %v707, %v842
        %v844 = vpop.f32.mrb[0].mxu0
        %845 = vmatprep.mubr.bf16.mxu0 0
        %846 = vmatmul.mubr.bf16.gmra.mrb[0].mxu0 %v677
        %v847 = vpop.f32.mrb[0].mxu0
        %v848 = vadd.f32 %v707, %v847
        %v849 = vpop.f32.mrb[0].mxu0
        %v850 = vpop.f32.mrb[0].mxu0
        %v851 = vadd.f32 %v707, %v850
        %v852 = vpop.f32.mrb[0].mxu0
        %853 = vmatprep.mubr.bf16.mxu0 0
        %854 = vmatmul.mubr.bf16.gmra.mrb[0].mxu0 %v678
        %v855 = vpop.f32.mrb[0].mxu0
        %v856 = vadd.f32 %v707, %v855
        %v857 = vpop.f32.mrb[0].mxu0
        %v858 = vpop.f32.mrb[0].mxu0
        %v859 = vadd.f32 %v707, %v858
        %v860 = vpop.f32.mrb[0].mxu0
        %861 = vmatprep.mubr.bf16.mxu0 0
        %862 = vmatmul.mubr.bf16.gmra.mrb[0].mxu0 %v679
        %v863 = vpop.f32.mrb[0].mxu0
        %v864 = vadd.f32 %v707, %v863
        %v865 = vpop.f32.mrb[0].mxu0
        %v866 = vpop.f32.mrb[0].mxu0
        %v867 = vadd.f32 %v707, %v866
        %v868 = vpop.f32.mrb[0].mxu0
        %869 = vmatprep.mubr.bf16.mxu0 0
        %870 = vmatmul.mubr.bf16.gmra.mrb[0].mxu0 %v680
        %v871 = vpop.f32.mrb[0].mxu0
        %v872 = vadd.f32 %v707, %v871
        %v873 = vpop.f32.mrb[0].mxu0
        %v874 = vpop.f32.mrb[0].mxu0
        %v875 = vadd.f32 %v707, %v874
        %v876 = vpop.f32.mrb[0].mxu0
        %877 = vmatprep.mubr.bf16.mxu0 0
        %878 = vmatmul.mubr.bf16.gmra.mrb[0].mxu0 %v681
        %v879 = vpop.f32.mrb[0].mxu0
        %v880 = vadd.f32 %v707, %v879
        %v881 = vpop.f32.mrb[0].mxu0
        %v882 = vpop.f32.mrb[0].mxu0
        %v883 = vadd.f32 %v707, %v882
        %v884 = vpop.f32.mrb[0].mxu0
        %885 = vmatprep.mubr.bf16.mxu0 0
        %886 = vmatmul.mubr.bf16.gmra.mrb[0].mxu0 %v682
        %v887 = vpop.f32.mrb[0].mxu0
        %v888 = vadd.f32 %v707, %v887
        %v889 = vpop.f32.mrb[0].mxu0
        %v890 = vpop.f32.mrb[0].mxu0
        %v891 = vadd.f32 %v707, %v890
        %v892 = vpop.f32.mrb[0].mxu0
        %893 = vmatprep.mubr.bf16.mxu0 0
        %894 = vmatmul.mubr.bf16.gmra.mrb[0].mxu0 %v683
        %v895 = vpop.f32.mrb[0].mxu0
        %v896 = vadd.f32 %v707, %v895
        %v897 = vpop.f32.mrb[0].mxu0
        %v898 = vpop.f32.mrb[0].mxu0
        %v899 = vadd.f32 %v707, %v898
        %v900 = vpop.f32.mrb[0].mxu0
        %901 = vmatprep.mubr.bf16.mxu0 0
        %902 = vmatmul.mubr.bf16.gmra.mrb[0].mxu0 %v684
        %v903 = vpop.f32.mrb[0].mxu0
        %v904 = vadd.f32 %v707, %v903
        %v905 = vpop.f32.mrb[0].mxu0
        %v906 = vpop.f32.mrb[0].mxu0
        %v907 = vadd.f32 %v707, %v906
        %v908 = vpop.f32.mrb[0].mxu0
        %909 = vmatprep.mubr.bf16.mxu0 0
        %910 = vmatmul.mubr.bf16.gmra.mrb[0].mxu0 %v685
        %v911 = vpop.f32.mrb[0].mxu0
        %v912 = vadd.f32 %v707, %v911
        %v913 = vpop.f32.mrb[0].mxu0
        %v914 = vpop.f32.mrb[0].mxu0
        %v915 = vadd.f32 %v707, %v914
        %v916 = vpop.f32.mrb[0].mxu0
        %917 = vdwg.mxu0
        %v918 = vmax.f32 %v792, 0.0
        %v919 = vmax.f32 %v795, 0.0
        %v920 = vmax.f32 %v800, 0.0
        %v921 = vmax.f32 %v803, 0.0
        %v922 = vmax.f32 %v808, 0.0
        %v923 = vmax.f32 %v811, 0.0
        %v924 = vmax.f32 %v816, 0.0
        %v925 = vmax.f32 %v819, 0.0
        %v926 = vmax.f32 %v824, 0.0
        %v927 = vmax.f32 %v827, 0.0
        %v928 = vmax.f32 %v832, 0.0
        %v929 = vmax.f32 %v835, 0.0
        %v930 = vmax.f32 %v840, 0.0
        %v931 = vmax.f32 %v843, 0.0
        %v932 = vmax.f32 %v848, 0.0
        %v933 = vmax.f32 %v851, 0.0
        %v934 = vmax.f32 %v856, 0.0
        %v935 = vmax.f32 %v859, 0.0
        %v936 = vmax.f32 %v864, 0.0
        %v937 = vmax.f32 %v867, 0.0
        %v938 = vmax.f32 %v872, 0.0
        %v939 = vmax.f32 %v875, 0.0
        %v940 = vmax.f32 %v880, 0.0
        %v941 = vmax.f32 %v883, 0.0
        %v942 = vmax.f32 %v888, 0.0
        %v943 = vmax.f32 %v891, 0.0
        %v944 = vmax.f32 %v896, 0.0
        %v945 = vmax.f32 %v899, 0.0
        %v946 = vmax.f32 %v904, 0.0
        %v947 = vmax.f32 %v907, 0.0
        %v948 = vmax.f32 %v912, 0.0
        %v949 = vmax.f32 %v915, 0.0
        %v950 = vpack.c.bf16 %v919, %v918
        %v951 = vpack.c.bf16 %v921, %v920
        %v952 = vpack.c.bf16 %v923, %v922
        %v953 = vpack.c.bf16 %v925, %v924
        %v954 = vpack.c.bf16 %v927, %v926
        %v955 = vpack.c.bf16 %v929, %v928
        %v956 = vpack.c.bf16 %v931, %v930
        %v957 = vpack.c.bf16 %v933, %v932
        %v958 = vpack.c.bf16 %v935, %v934
        %v959 = vpack.c.bf16 %v937, %v936
        %v960 = vpack.c.bf16 %v939, %v938
        %v961 = vpack.c.bf16 %v941, %v940
        %v962 = vpack.c.bf16 %v943, %v942
        %v963 = vpack.c.bf16 %v945, %v944
        %v964 = vpack.c.bf16 %v947, %v946
        %v965 = vpack.c.bf16 %v949, %v948
        %s966 = smul.u32 %s23, 2
        %s967 = sadd.s32 %s966, %s24
        %s968 = smul.u32 %s967, 256
        %v969 = vlaneseq
        %v970 = vand.u32 %v969, 127
        %v971 = vadd.s32 %v970, 128
        %v972 = vstv %s968
        %v973 = vadd.s32 %v972, %v970
        %v974 = vadd.s32 %v972, %v971
        %v975 = vld [vmem:[%s1] sm:$0xff]
        %976 = vset.pattern.permute.xlu0 0
        %977 = vperm.xlu0 %976, %v975
        %v978 = vpop.permute.xlu0 %977
        %vm979 = vcmp.ge.s32.totalorder %v973, %v978
        %vm980 = vcmp.ge.s32.totalorder %v974, %v978
        %v981 = vld [vmem:[%s2] sm:$0xff]
        %982 = vset.pattern.permute.xlu0 0
        %983 = vperm.xlu0 %982, %v981
        %v984 = vpop.permute.xlu0 %983
        %vm985 = vcmp.lt.s32.totalorder %v973, %v984
        %vm986 = vcmp.lt.s32.totalorder %v974, %v984
        %vm987 = vmand %vm979, %vm985
        %vm988 = vmand %vm980, %vm986
        %v989 = vsel %vm987, 1.0, 0.0
        %v990 = vsel %vm988, 1.0, 0.0
        %v991 = vpack.c.bf16 %v989, %v989
        %v992 = vpack.c.bf16 %v990, %v990
        %v993 = vld [vmem:[#allocation2] sm:$0xff]
        %994 = vmatprep.subr.bf16.mxu0 0
        %995 = vmatpush1.bf16.msra.mxu0 %v950
        %996 = vmatprep.subr.bf16.mxu0 0
        %997 = vmatpush1.bf16.msra.mxu0 %v951
        %998 = vmatprep.subr.bf16.mxu0 0
        %999 = vmatpush1.bf16.msra.mxu0 %v952
        %1000 = vmatprep.subr.bf16.mxu0 0
        %1001 = vmatpush1.bf16.msra.mxu0 %v953
        %1002 = vmatprep.subr.bf16.mxu0 0
        %1003 = vmatpush1.bf16.msra.mxu0 %v954
        %1004 = vmatprep.subr.bf16.mxu0 0
        %1005 = vmatpush1.bf16.msra.mxu0 %v955
        %1006 = vmatprep.subr.bf16.mxu0 0
        %1007 = vmatpush1.bf16.msra.mxu0 %v956
        %1008 = vmatprep.subr.bf16.mxu0 0
        %1009 = vmatpush1.bf16.msra.mxu0 %v957
        %1010 = vmatprep.subr.bf16.mxu0 0
        %1011 = vmatpush1.bf16.msra.mxu0 %v958
        %1012 = vmatprep.subr.bf16.mxu0 0
        %1013 = vmatpush1.bf16.msra.mxu0 %v959
        %1014 = vmatprep.subr.bf16.mxu0 0
        %1015 = vmatpush1.bf16.msra.mxu0 %v960
        %1016 = vmatprep.subr.bf16.mxu0 0
        %1017 = vmatpush1.bf16.msra.mxu0 %v961
        %1018 = vmatprep.subr.bf16.mxu0 0
        %1019 = vmatpush1.bf16.msra.mxu0 %v962
        %1020 = vmatprep.subr.bf16.mxu0 0
        %1021 = vmatpush1.bf16.msra.mxu0 %v963
        %1022 = vmatprep.subr.bf16.mxu0 0
        %1023 = vmatpush1.bf16.msra.mxu0 %v964
        %1024 = vmatprep.subr.bf16.mxu0 0
        %1025 = vmatpush1.bf16.msra.mxu0 %v965
        %1026 = vmatprep.mubr.bf16.mxu0 %v992
        %1027 = vmatmul.mubr.bf16.gmra.mrb[0].mxu0 %v991
        %v1028 = vpop.f32.mrb[0].mxu0
        %v1029 = vadd.f32 0.0, %v1028
        %v1030 = vpop.f32.mrb[0].mxu0
        %v1031 = vpop.f32.mrb[0].mxu0
        %v1032 = vpop.f32.mrb[0].mxu0
        %1033 = vdwg.mxu0
        %v1034 = vadd.f32 %v993, %v1029
        %1035 = vst [vmem:[#allocation2] sm:$0xff] %v1034
        // Predicated region
        $region53: #{tpu_custom_call.1} parent=47 // pred_check
          %p1036 = pneg %p205
        $region54: #{tpu_custom_call.1} parent=47 // pred_check_branch
          %1038 = sbr.rel (%p1036) target = $region56
        $region55: #{tpu_custom_call.1} parent=47 // pred_region
          %s1040 = ssub.s32 128, 128
          %1041 = vsyncadd [#allocation3], %s1040
          %s1042 = smul.addr %s23, 128
          %s1043 = scalar_lea.hbm %s7, %s1042
          %s1045 = sshll.u32 [#allocation2], 4
          %s1046 = int_to_ptr.vmem [resolvable:$true] %s1045
          %1048 = dma.vmem_to_hbm [thread:$0]  %s1046, 128, %s1043, [#allocation3]
        $region56: #{tpu_custom_call.1} parent=47 // pred_fallthru
          _
        // Predicated region
        $region57: #{tpu_custom_call.1} parent=47 // pred_check
          %p1049 = pneg %p205
        $region58: #{tpu_custom_call.1} parent=47 // pred_check_branch
          %1051 = sbr.rel (%p1049) target = $region60
        $region59: #{tpu_custom_call.1} parent=47 // pred_region
          %1052 = dma.done [#allocation3], 128
        $region60: #{tpu_custom_call.1} parent=47 // pred_fallthru
          _
      $region48: #{tpu_custom_call.1} parent=5 // pred_fallthru
        _
      %p1053 = scmp.le.s32.totalorder 2, %s14
      // Predicated region
      $region61: #{tpu_custom_call.1} parent=5 // pred_check
        %p1054 = pneg %p1053
      $region62: #{tpu_custom_call.1} parent=5 // pred_check_branch
        %1056 = sbr.rel (%p1054) target = $region64
      $region63: #{tpu_custom_call.1} parent=5 // pred_region
        %s1057 = ssub.s32 %s14, 2
      $region64: #{tpu_custom_call.1} parent=5 // pred_fallthru
        _
    $region6: #{tpu_custom_call.1} parent=1 // loop_footer
      %s18 = sadd.s32 1, %s14
    $region7: #{tpu_custom_call.1} parent=1 // loop_footer_branch
      %13 = sbr.rel target = $region3
    $region8: #{tpu_custom_call.1} parent=1 // loop_exit
      _
    %1058 = vsyncpa [#allocation3], 1
    %s1059 = scalar_lea.sflag [#allocation3], 1
    %1060 = vsyncpa %s1059, 1

</llo_original>
